<compile_context>
chip_gen: v7x
topology: tpu7x:2x2x1
jax: 0.10.0
libtpu: 0.0.40
codegen_flags: <defaults>
</compile_context>

<pallas_src>
import functools

import jax
import jax.numpy as jnp
from jax.experimental import pallas as pl
from jax.experimental.pallas import tpu as pltpu


def _round_up(x: int, m: int) -> int:
    return (x + m - 1) // m * m


def actor_kernel(s_ref, w1_ref, b1_ref, w2_ref, b2_ref, w3_ref, b3_ref,
                 scale_ref, offset_ref, out_ref):
    """One batch tile: 3 fused MXU matmuls + f32 epilogue (ReLU/ReLU/tanh-affine)."""
    # Layer 1: Linear + ReLU (bf16 MXU inputs, f32 accumulation / epilogue).
    h1 = jnp.dot(s_ref[...], w1_ref[...], preferred_element_type=jnp.float32)
    h1 = jnp.maximum(h1 + b1_ref[...], 0.0)

    # Layer 2: Linear + ReLU.
    h2 = jnp.dot(h1.astype(w2_ref.dtype), w2_ref[...],
                 preferred_element_type=jnp.float32)
    h2 = jnp.maximum(h2 + b2_ref[...], 0.0)

    # Layer 3: Linear, then bounded-tanh squash (tanh on EUP, affine on VPU).
    z = jnp.dot(h2.astype(w3_ref.dtype), w3_ref[...],
                preferred_element_type=jnp.float32)
    z = z + b3_ref[...]
    out_ref[...] = (scale_ref[...] * jnp.tanh(z)
                    + offset_ref[...]).astype(out_ref.dtype)


@functools.partial(jax.jit, static_argnames=("tile_batch", "matmul_dtype"))
def actor_forward(s, w1, b1, w2, b2, w3, b3, max_action, min_action,
                  *, tile_batch: int = 512, matmul_dtype=jnp.bfloat16):
    """Pallas Actor forward.

    s: (batch, state_dim) f32
    w*: (in_features, out_features)  (transpose of nn.Linear's (out, in) layout)
    b*: (out_features,) or (1, out_features)
    max_action/min_action: (action_dim,)
    Returns (batch, action_dim) f32.
    """
    batch, state_dim = s.shape
    hidden = w1.shape[1]
    action_dim = w3.shape[1]

    # Lane-dense (multiple-of-128) padded feature dims.
    S = _round_up(state_dim, 128)
    H = _round_up(hidden, 128)
    A = _round_up(action_dim, 128)

    # Batch tiling: large tiles amortize the ~0.35us per-step overhead while
    # never exceeding what the batch actually needs (tb is a multiple of 8).
    tb = min(tile_batch, _round_up(batch, 8))
    B = _round_up(batch, tb)
    grid = (B // tb,)

    def pad2(x, rows, cols, dtype):
        x = x if x.ndim == 2 else x.reshape(1, -1)
        return jnp.pad(
            x, ((0, rows - x.shape[0]), (0, cols - x.shape[1]))).astype(dtype)

    # Zero padding keeps the math exact: padded weight rows/cols and padded
    # bias/scale/offset entries contribute exactly 0 to the sliced-out result.
    s_p = pad2(s, B, S, matmul_dtype)
    w1_p = pad2(w1, S, H, matmul_dtype)
    w2_p = pad2(w2, H, H, matmul_dtype)
    w3_p = pad2(w3, H, A, matmul_dtype)
    b1_p = pad2(b1, 1, H, jnp.float32)
    b2_p = pad2(b2, 1, H, jnp.float32)
    b3_p = pad2(b3, 1, A, jnp.float32)

    max_a = jnp.asarray(max_action, jnp.float32).reshape(1, -1)
    min_a = jnp.asarray(min_action, jnp.float32).reshape(1, -1)
    scale = pad2((max_a - min_a) * 0.5, 1, A, jnp.float32)
    offset = pad2((max_a + min_a) * 0.5, 1, A, jnp.float32)

    # Weights / biases / bounds: same block every grid step -> VMEM-resident,
    # DMA'd once.  State / output: streamed per batch tile (double-buffered).
    resident = lambda shape: pl.BlockSpec(shape, lambda i: (0, 0))

    out_padded = pl.pallas_call(
        actor_kernel,
        out_shape=jax.ShapeDtypeStruct((B, A), jnp.float32),
        grid=grid,
        in_specs=[
            pl.BlockSpec((tb, S), lambda i: (i, 0)),      # s tile (streamed)
            resident(w1_p.shape), resident(b1_p.shape),
            resident(w2_p.shape), resident(b2_p.shape),
            resident(w3_p.shape), resident(b3_p.shape),
            resident(scale.shape), resident(offset.shape),
        ],
        out_specs=pl.BlockSpec((tb, A), lambda i: (i, 0)),
        compiler_params=pltpu.CompilerParams(
            dimension_semantics=("parallel",),            # megacore on v7x
        ),
    )(s_p, w1_p, b1_p, w2_p, b2_p, w3_p, b3_p, scale, offset)

    return out_padded[:batch, :action_dim]


def init_linear_params(key, fan_in, fan_out):
    # Deterministic init mimicking nn.Linear's U(-1/sqrt(fan_in), 1/sqrt(fan_in)).
    kw, kb = jax.random.split(key)
    bound = 1.0 / jnp.sqrt(float(fan_in))
    w = jax.random.uniform(kw, (fan_in, fan_out), jnp.float32, -bound, bound)
    b = jax.random.uniform(kb, (fan_out,), jnp.float32, -bound, bound)
    return w, b


if __name__ == "__main__":
    # Small shapes consistent with the module's forward.
    batch = 2
    state_dim = 4
    hidden_width = 32
    action_dim = 3

    key = jax.random.PRNGKey(0)
    k_s, k1, k2, k3 = jax.random.split(key, 4)

    s = jax.random.normal(k_s, (batch, state_dim), jnp.float32)

    w1, b1 = init_linear_params(k1, state_dim, hidden_width)
    w2, b2 = init_linear_params(k2, hidden_width, hidden_width)
    w3, b3 = init_linear_params(k3, hidden_width, action_dim)

    max_action = jnp.array([2.0, 1.0, 0.5], dtype=jnp.float32)
    min_action = jnp.array([-2.0, -1.0, 0.0], dtype=jnp.float32)

    a = actor_forward(s, w1, b1, w2, b2, w3, b3, max_action, min_action)
    a = jax.block_until_ready(a)
    assert a.shape == (batch, action_dim)

    # Reference 1: mirrors the kernel's dtype choices (bf16 MXU inputs,
    # f32 accumulation + f32 epilogue) -> tight tolerance.
    bf16 = jnp.bfloat16
    h1 = jnp.maximum(
        jnp.dot(s.astype(bf16), w1.astype(bf16),
                preferred_element_type=jnp.float32) + b1, 0.0)
    h2 = jnp.maximum(
        jnp.dot(h1.astype(bf16), w2.astype(bf16),
                preferred_element_type=jnp.float32) + b2, 0.0)
    z = jnp.dot(h2.astype(bf16), w3.astype(bf16),
                preferred_element_type=jnp.float32) + b3
    ref_bf16 = ((max_action - min_action) / 2 * jnp.tanh(z)
                + (max_action + min_action) / 2)
    assert jnp.allclose(a, ref_bf16, atol=1e-3, rtol=1e-3)

    # Reference 2: pure-f32 PyTorch-equivalent math -> loose tolerance
    # (only the matmul inputs are bf16 in the kernel).
    h1f = jnp.maximum(s @ w1 + b1, 0.0)
    h2f = jnp.maximum(h1f @ w2 + b2, 0.0)
    ref_f32 = ((max_action - min_action) / 2 * jnp.tanh(h2f @ w3 + b3)
               + (max_action + min_action) / 2)
    assert jnp.allclose(a, ref_f32, atol=5e-2, rtol=5e-2)

    print("KERNEL_OK")
</pallas_src>

<mosaic_0001>
module attributes {stable_mosaic.version = 11 : i64} {
  func.func @actor_kernel(%arg0: i32, %arg1: memref<8x128xbf16, #tpu.memory_space<vmem>>, %arg2: memref<128x128xbf16, #tpu.memory_space<vmem>>, %arg3: memref<1x128xf32, #tpu.memory_space<vmem>>, %arg4: memref<128x128xbf16, #tpu.memory_space<vmem>>, %arg5: memref<1x128xf32, #tpu.memory_space<vmem>>, %arg6: memref<128x128xbf16, #tpu.memory_space<vmem>>, %arg7: memref<1x128xf32, #tpu.memory_space<vmem>>, %arg8: memref<1x128xf32, #tpu.memory_space<vmem>>, %arg9: memref<1x128xf32, #tpu.memory_space<vmem>>, %arg10: memref<8x128xf32, #tpu.memory_space<vmem>>) attributes {dimension_semantics = [#tpu.dimension_semantics<parallel>], iteration_bounds = array<i64: 1>, scalar_prefetch = 0 : i64, scratch_operands = 0 : i64, tpu.core_type = #tpu.core_type<tc>, window_params = [{transform_indices = @transform_0, window_bounds = array<i64: 8, 128>}, {pipeline_mode = #tpu.pipeline_mode<synchronous>, transform_indices = @transform_1, window_bounds = array<i64: 128, 128>}, {pipeline_mode = #tpu.pipeline_mode<synchronous>, transform_indices = @transform_2, window_bounds = array<i64: 1, 128>}, {pipeline_mode = #tpu.pipeline_mode<synchronous>, transform_indices = @transform_3, window_bounds = array<i64: 128, 128>}, {pipeline_mode = #tpu.pipeline_mode<synchronous>, transform_indices = @transform_4, window_bounds = array<i64: 1, 128>}, {pipeline_mode = #tpu.pipeline_mode<synchronous>, transform_indices = @transform_5, window_bounds = array<i64: 128, 128>}, {pipeline_mode = #tpu.pipeline_mode<synchronous>, transform_indices = @transform_6, window_bounds = array<i64: 1, 128>}, {pipeline_mode = #tpu.pipeline_mode<synchronous>, transform_indices = @transform_7, window_bounds = array<i64: 1, 128>}, {pipeline_mode = #tpu.pipeline_mode<synchronous>, transform_indices = @transform_8, window_bounds = array<i64: 1, 128>}, {transform_indices = @transform_9, window_bounds = array<i64: 8, 128>}]} {
    %c0 = arith.constant 0 : index
    %c0_0 = arith.constant 0 : index
    %0 = vector.load %arg1[%c0, %c0_0] : memref<8x128xbf16, #tpu.memory_space<vmem>>, vector<8x128xbf16>
    %c0_1 = arith.constant 0 : index
    %c0_2 = arith.constant 0 : index
    %1 = vector.load %arg2[%c0_1, %c0_2] : memref<128x128xbf16, #tpu.memory_space<vmem>>, vector<128x128xbf16>
    %cst = arith.constant dense<0.000000e+00> : vector<8x128xf32>
    %2 = tpu.matmul %0, %1, %cst {dimension_numbers = #tpu.dot_dimension_numbers<[1], [0], [0], [1], [0, 0, 1, 1], [], []>} : vector<8x128xbf16>, vector<128x128xbf16>, vector<8x128xf32> -> vector<8x128xf32>
    %c0_3 = arith.constant 0 : index
    %c0_4 = arith.constant 0 : index
    %3 = vector.load %arg3[%c0_3, %c0_4] : memref<1x128xf32, #tpu.memory_space<vmem>>, vector<1x128xf32>
    %4 = vector.broadcast %3 : vector<1x128xf32> to vector<8x128xf32>
    %5 = arith.addf %2, %4 : vector<8x128xf32>
    %cst_5 = arith.constant 0.000000e+00 : f32
    %6 = vector.broadcast %cst_5 : f32 to vector<8x128xf32>
    %7 = arith.maximumf %5, %6 : vector<8x128xf32>
    %8 = arith.truncf %7 : vector<8x128xf32> to vector<8x128xbf16>
    %c0_6 = arith.constant 0 : index
    %c0_7 = arith.constant 0 : index
    %9 = vector.load %arg4[%c0_6, %c0_7] : memref<128x128xbf16, #tpu.memory_space<vmem>>, vector<128x128xbf16>
    %cst_8 = arith.constant dense<0.000000e+00> : vector<8x128xf32>
    %10 = tpu.matmul %8, %9, %cst_8 {dimension_numbers = #tpu.dot_dimension_numbers<[1], [0], [0], [1], [0, 0, 1, 1], [], []>} : vector<8x128xbf16>, vector<128x128xbf16>, vector<8x128xf32> -> vector<8x128xf32>
    %c0_9 = arith.constant 0 : index
    %c0_10 = arith.constant 0 : index
    %11 = vector.load %arg5[%c0_9, %c0_10] : memref<1x128xf32, #tpu.memory_space<vmem>>, vector<1x128xf32>
    %12 = vector.broadcast %11 : vector<1x128xf32> to vector<8x128xf32>
    %13 = arith.addf %10, %12 : vector<8x128xf32>
    %cst_11 = arith.constant 0.000000e+00 : f32
    %14 = vector.broadcast %cst_11 : f32 to vector<8x128xf32>
    %15 = arith.maximumf %13, %14 : vector<8x128xf32>
    %16 = arith.truncf %15 : vector<8x128xf32> to vector<8x128xbf16>
    %c0_12 = arith.constant 0 : index
    %c0_13 = arith.constant 0 : index
    %17 = vector.load %arg6[%c0_12, %c0_13] : memref<128x128xbf16, #tpu.memory_space<vmem>>, vector<128x128xbf16>
    %cst_14 = arith.constant dense<0.000000e+00> : vector<8x128xf32>
    %18 = tpu.matmul %16, %17, %cst_14 {dimension_numbers = #tpu.dot_dimension_numbers<[1], [0], [0], [1], [0, 0, 1, 1], [], []>} : vector<8x128xbf16>, vector<128x128xbf16>, vector<8x128xf32> -> vector<8x128xf32>
    %c0_15 = arith.constant 0 : index
    %c0_16 = arith.constant 0 : index
    %19 = vector.load %arg7[%c0_15, %c0_16] : memref<1x128xf32, #tpu.memory_space<vmem>>, vector<1x128xf32>
    %20 = vector.broadcast %19 : vector<1x128xf32> to vector<8x128xf32>
    %21 = arith.addf %18, %20 : vector<8x128xf32>
    %c0_17 = arith.constant 0 : index
    %c0_18 = arith.constant 0 : index
    %22 = vector.load %arg8[%c0_17, %c0_18] : memref<1x128xf32, #tpu.memory_space<vmem>>, vector<1x128xf32>
    %23 = math.tanh %21 : vector<8x128xf32>
    %24 = vector.broadcast %22 : vector<1x128xf32> to vector<8x128xf32>
    %25 = arith.mulf %24, %23 : vector<8x128xf32>
    %c0_19 = arith.constant 0 : index
    %c0_20 = arith.constant 0 : index
    %26 = vector.load %arg9[%c0_19, %c0_20] : memref<1x128xf32, #tpu.memory_space<vmem>>, vector<1x128xf32>
    %27 = vector.broadcast %26 : vector<1x128xf32> to vector<8x128xf32>
    %28 = arith.addf %25, %27 : vector<8x128xf32>
    %c0_21 = arith.constant 0 : index
    %c0_22 = arith.constant 0 : index
    %29 = vector.load %arg10[%c0_21, %c0_22] : memref<8x128xf32, #tpu.memory_space<vmem>>, vector<8x128xf32>
    tpu.vector_store %arg10[%c0_21, %c0_22], %28 {strides = array<i32>} : memref<8x128xf32, #tpu.memory_space<vmem>>, vector<8x128xf32>,
    return
  }
  func.func @transform_0(%arg0: i32) -> (i32, i32) {
    %c0_i32 = arith.constant 0 : i32
    %c0_i32_0 = arith.constant 0 : i32
    return %arg0, %c0_i32 : i32, i32
  }
  func.func @transform_1(%arg0: i32) -> (i32, i32) {
    %c0_i32 = arith.constant 0 : i32
    %c0_i32_0 = arith.constant 0 : i32
    %c0_i32_1 = arith.constant 0 : i32
    return %c0_i32, %c0_i32_0 : i32, i32
  }
  func.func @transform_2(%arg0: i32) -> (i32, i32) {
    %c0_i32 = arith.constant 0 : i32
    %c0_i32_0 = arith.constant 0 : i32
    %c0_i32_1 = arith.constant 0 : i32
    return %c0_i32, %c0_i32_0 : i32, i32
  }
  func.func @transform_3(%arg0: i32) -> (i32, i32) {
    %c0_i32 = arith.constant 0 : i32
    %c0_i32_0 = arith.constant 0 : i32
    %c0_i32_1 = arith.constant 0 : i32
    return %c0_i32, %c0_i32_0 : i32, i32
  }
  func.func @transform_4(%arg0: i32) -> (i32, i32) {
    %c0_i32 = arith.constant 0 : i32
    %c0_i32_0 = arith.constant 0 : i32
    %c0_i32_1 = arith.constant 0 : i32
    return %c0_i32, %c0_i32_0 : i32, i32
  }
  func.func @transform_5(%arg0: i32) -> (i32, i32) {
    %c0_i32 = arith.constant 0 : i32
    %c0_i32_0 = arith.constant 0 : i32
    %c0_i32_1 = arith.constant 0 : i32
    return %c0_i32, %c0_i32_0 : i32, i32
  }
  func.func @transform_6(%arg0: i32) -> (i32, i32) {
    %c0_i32 = arith.constant 0 : i32
    %c0_i32_0 = arith.constant 0 : i32
    %c0_i32_1 = arith.constant 0 : i32
    return %c0_i32, %c0_i32_0 : i32, i32
  }
  func.func @transform_7(%arg0: i32) -> (i32, i32) {
    %c0_i32 = arith.constant 0 : i32
    %c0_i32_0 = arith.constant 0 : i32
    %c0_i32_1 = arith.constant 0 : i32
    return %c0_i32, %c0_i32_0 : i32, i32
  }
  func.func @transform_8(%arg0: i32) -> (i32, i32) {
    %c0_i32 = arith.constant 0 : i32
    %c0_i32_0 = arith.constant 0 : i32
    %c0_i32_1 = arith.constant 0 : i32
    return %c0_i32, %c0_i32_0 : i32, i32
  }
  func.func @transform_9(%arg0: i32) -> (i32, i32) {
    %c0_i32 = arith.constant 0 : i32
    %c0_i32_0 = arith.constant 0 : i32
    return %arg0, %c0_i32 : i32, i32
  }
}

</mosaic_0001>

<llo_original>
// kernel: actor_forward.1
$region0: #{actor_forward.1}
  #allocation0 [shape = 'u32[]', space=smem, size = 0x4, offset = 0x4, fixed_abs, tag = 'smem constant byte address 0x4 - core index']
  #allocation1 [shape = 'u32[144,128]{1,0:T(1,128)}', space=vmem, size = 0x12000, scoped, tag = 'internal scratch']
  %s0 = inlined_call_operand.vmem [shape: bf16[8,128], index: 0, kind: input, shape index: {}]
  %s1 = inlined_call_operand.vmem [shape: bf16[128,128], index: 1, kind: input, shape index: {}]
  %s2 = inlined_call_operand.vmem [shape: f32[1,128], index: 2, kind: input, shape index: {}]
  %s3 = inlined_call_operand.vmem [shape: bf16[128,128], index: 3, kind: input, shape index: {}]
  %s4 = inlined_call_operand.vmem [shape: f32[1,128], index: 4, kind: input, shape index: {}]
  %s5 = inlined_call_operand.vmem [shape: bf16[128,128], index: 5, kind: input, shape index: {}]
  %s6 = inlined_call_operand.vmem [shape: f32[1,128], index: 6, kind: input, shape index: {}]
  %s7 = inlined_call_operand.vmem [shape: f32[1,128], index: 7, kind: input, shape index: {}]
  %s8 = inlined_call_operand.vmem [shape: f32[1,128], index: 8, kind: input, shape index: {}]
  %s9 = inlined_call_operand.vmem [shape: f32[8,128], index: 9, kind: output, shape index: {}]
  %s10 = sld [smem:[#allocation0]]
  $region46: #{actor_forward.1} parent=0
    _
  %s12 = ssub.s32 1, %s10
  %s13 = scalar_select 0, %s12, %s10
  // Predicated region
  $region2: #{actor_forward.1} parent=0 // pred_check
    _
  $region3: #{actor_forward.1} parent=0 // pred_check_branch
    %15 = sbr.rel (0) target = $region5
  $region4: #{actor_forward.1} parent=0 // pred_region
    _
  $region5: #{actor_forward.1} parent=0 // pred_fallthru
    _
  // Predicated region
  $region6: #{actor_forward.1} parent=0 // pred_check
    _
  $region7: #{actor_forward.1} parent=0 // pred_check_branch
    %17 = sbr.rel (0) target = $region9
  $region8: #{actor_forward.1} parent=0 // pred_region
    _
  $region9: #{actor_forward.1} parent=0 // pred_fallthru
    _
  // Predicated region
  $region10: #{actor_forward.1} parent=0 // pred_check
    _
  $region11: #{actor_forward.1} parent=0 // pred_check_branch
    %19 = sbr.rel (0) target = $region13
  $region12: #{actor_forward.1} parent=0 // pred_region
    _
  $region13: #{actor_forward.1} parent=0 // pred_fallthru
    _
  // Predicated region
  $region14: #{actor_forward.1} parent=0 // pred_check
    _
  $region15: #{actor_forward.1} parent=0 // pred_check_branch
    %21 = sbr.rel (0) target = $region17
  $region16: #{actor_forward.1} parent=0 // pred_region
    _
  $region17: #{actor_forward.1} parent=0 // pred_fallthru
    _
  // Predicated region
  $region18: #{actor_forward.1} parent=0 // pred_check
    _
  $region19: #{actor_forward.1} parent=0 // pred_check_branch
    %23 = sbr.rel (0) target = $region21
  $region20: #{actor_forward.1} parent=0 // pred_region
    _
  $region21: #{actor_forward.1} parent=0 // pred_fallthru
    _
  // Predicated region
  $region22: #{actor_forward.1} parent=0 // pred_check
    _
  $region23: #{actor_forward.1} parent=0 // pred_check_branch
    %25 = sbr.rel (0) target = $region25
  $region24: #{actor_forward.1} parent=0 // pred_region
    _
  $region25: #{actor_forward.1} parent=0 // pred_fallthru
    _
  // Predicated region
  $region26: #{actor_forward.1} parent=0 // pred_check
    _
  $region27: #{actor_forward.1} parent=0 // pred_check_branch
    %27 = sbr.rel (0) target = $region29
  $region28: #{actor_forward.1} parent=0 // pred_region
    _
  $region29: #{actor_forward.1} parent=0 // pred_fallthru
    _
  // Predicated region
  $region30: #{actor_forward.1} parent=0 // pred_check
    _
  $region31: #{actor_forward.1} parent=0 // pred_check_branch
    %29 = sbr.rel (0) target = $region33
  $region32: #{actor_forward.1} parent=0 // pred_region
    _
  $region33: #{actor_forward.1} parent=0 // pred_fallthru
    _
  // Predicated region
  $region34: #{actor_forward.1} parent=0 // pred_check
    _
  $region35: #{actor_forward.1} parent=0 // pred_check_branch
    %31 = sbr.rel (0) target = $region37
  $region36: #{actor_forward.1} parent=0 // pred_region
    _
  $region37: #{actor_forward.1} parent=0 // pred_fallthru
    _
  %v33 = vld [vmem:[%s0] sm:$0xf]
  %v34 = vld [vmem:[%s1] sm:$0xf]
  %v35 = vld [vmem:[%s1 + $0x4] sm:$0xf]
  %v36 = vld [vmem:[%s1 + $0x8] sm:$0xf]
  %v37 = vld [vmem:[%s1 + $0xc] sm:$0xf]
  %v38 = vld [vmem:[%s1 + $0x10] sm:$0xf]
  %v39 = vld [vmem:[%s1 + $0x14] sm:$0xf]
  %v40 = vld [vmem:[%s1 + $0x18] sm:$0xf]
  %v41 = vld [vmem:[%s1 + $0x1c] sm:$0xf]
  %v42 = vld [vmem:[%s1 + $0x20] sm:$0xf]
  %v43 = vld [vmem:[%s1 + $0x24] sm:$0xf]
  %v44 = vld [vmem:[%s1 + $0x28] sm:$0xf]
  %v45 = vld [vmem:[%s1 + $0x2c] sm:$0xf]
  %v46 = vld [vmem:[%s1 + $0x30] sm:$0xf]
  %v47 = vld [vmem:[%s1 + $0x34] sm:$0xf]
  %v48 = vld [vmem:[%s1 + $0x38] sm:$0xf]
  %v49 = vld [vmem:[%s1 + $0x3c] sm:$0xf]
  %v50 = vld [vmem:[%s2] sm:$0x1]
  %v52 = vlaneseq
  %v53 = vshrl.u32 %v52, 7
  %v54 = vsub.s32 0, %v53
  %v55 = vrot.slane %v50, %v54
  %v73 = vunpack.c.l.b16 %v34
  %v74 = vunpack.c.l.b16 %v35
  %v75 = vunpack.c.l.b16 %v36
  %v76 = vunpack.c.l.b16 %v37
  %v77 = vunpack.c.l.b16 %v38
  %v78 = vunpack.c.l.b16 %v39
  %v79 = vunpack.c.l.b16 %v40
  %v80 = vunpack.c.l.b16 %v41
  %v81 = vunpack.c.l.b16 %v42
  %v82 = vunpack.c.l.b16 %v43
  %v83 = vunpack.c.l.b16 %v44
  %v84 = vunpack.c.l.b16 %v45
  %v85 = vunpack.c.l.b16 %v46
  %v86 = vunpack.c.l.b16 %v47
  %v87 = vunpack.c.l.b16 %v48
  %v88 = vunpack.c.l.b16 %v49
  %v89 = vpack.c.b16 %v74, %v73
  %v90 = vpack.c.b16 %v76, %v75
  %v91 = vpack.c.b16 %v78, %v77
  %v92 = vpack.c.b16 %v80, %v79
  %v93 = vpack.c.b16 %v82, %v81
  %v94 = vpack.c.b16 %v84, %v83
  %v95 = vpack.c.b16 %v86, %v85
  %v96 = vpack.c.b16 %v88, %v87
  %105 = vmatprep.subr.bf16.mxu0 0
  %106 = vmatpush1.bf16.msra.mxu0 %v89
  %107 = vmatprep.subr.bf16.mxu0 0
  %108 = vmatpush1.bf16.msra.mxu0 %v90
  %109 = vmatprep.subr.bf16.mxu0 0
  %110 = vmatpush1.bf16.msra.mxu0 %v91
  %111 = vmatprep.subr.bf16.mxu0 0
  %112 = vmatpush1.bf16.msra.mxu0 %v92
  %113 = vmatprep.subr.bf16.mxu0 0
  %114 = vmatpush1.bf16.msra.mxu0 %v93
  %115 = vmatprep.subr.bf16.mxu0 0
  %116 = vmatpush1.bf16.msra.mxu0 %v94
  %117 = vmatprep.subr.bf16.mxu0 0
  %118 = vmatpush1.bf16.msra.mxu0 %v95
  %119 = vmatprep.subr.bf16.mxu0 0
  %120 = vmatpush1.bf16.msra.mxu0 %v96
  %121 = vmatprep.subr.bf16.mxu0 0
  %122 = vmatpush1.bf16.msra.mxu0 0
  %123 = vmatprep.subr.bf16.mxu0 0
  %124 = vmatpush1.bf16.msra.mxu0 0
  %125 = vmatprep.subr.bf16.mxu0 0
  %126 = vmatpush1.bf16.msra.mxu0 0
  %127 = vmatprep.subr.bf16.mxu0 0
  %128 = vmatpush1.bf16.msra.mxu0 0
  %129 = vmatprep.subr.bf16.mxu0 0
  %130 = vmatpush1.bf16.msra.mxu0 0
  %131 = vmatprep.subr.bf16.mxu0 0
  %132 = vmatpush1.bf16.msra.mxu0 0
  %133 = vmatprep.subr.bf16.mxu0 0
  %134 = vmatpush1.bf16.msra.mxu0 0
  %135 = vmatprep.subr.bf16.mxu0 0
  %136 = vmatpush1.bf16.msra.mxu0 0
  %137 = vmatprep.mubr.bf16.mxu0 0
  %138 = vmatmul.mubr.bf16.gmra.mrb[0].mxu0 %v33
  %v139 = vpop.f32.mrb[0].mxu0
  %v140 = vadd.f32 %v55, %v139
  %v141 = vpop.f32.mrb[0].mxu0
  %v142 = vpop.f32.mrb[0].mxu0
  %v143 = vpop.f32.mrb[0].mxu0
  %144 = vdwg.mxu0
  %v145 = vmax.f32 %v140, 0.0
  %v146 = vpack.c.bf16 %v145, %v145
  %v147 = vld [vmem:[%s3] sm:$0xf]
  %v148 = vld [vmem:[%s3 + $0x4] sm:$0xf]
  %v149 = vld [vmem:[%s3 + $0x8] sm:$0xf]
  %v150 = vld [vmem:[%s3 + $0xc] sm:$0xf]
  %v151 = vld [vmem:[%s3 + $0x10] sm:$0xf]
  %v152 = vld [vmem:[%s3 + $0x14] sm:$0xf]
  %v153 = vld [vmem:[%s3 + $0x18] sm:$0xf]
  %v154 = vld [vmem:[%s3 + $0x1c] sm:$0xf]
  %v155 = vld [vmem:[%s3 + $0x20] sm:$0xf]
  %v156 = vld [vmem:[%s3 + $0x24] sm:$0xf]
  %v157 = vld [vmem:[%s3 + $0x28] sm:$0xf]
  %v158 = vld [vmem:[%s3 + $0x2c] sm:$0xf]
  %v159 = vld [vmem:[%s3 + $0x30] sm:$0xf]
  %v160 = vld [vmem:[%s3 + $0x34] sm:$0xf]
  %v161 = vld [vmem:[%s3 + $0x38] sm:$0xf]
  %v162 = vld [vmem:[%s3 + $0x3c] sm:$0xf]
  %v163 = vld [vmem:[%s4] sm:$0x1]
  %v165 = vlaneseq
  %v166 = vshrl.u32 %v165, 7
  %v167 = vsub.s32 0, %v166
  %v168 = vrot.slane %v163, %v167
  %v186 = vunpack.c.l.b16 %v147
  %v187 = vunpack.c.l.b16 %v148
  %v188 = vunpack.c.l.b16 %v149
  %v189 = vunpack.c.l.b16 %v150
  %v190 = vunpack.c.l.b16 %v151
  %v191 = vunpack.c.l.b16 %v152
  %v192 = vunpack.c.l.b16 %v153
  %v193 = vunpack.c.l.b16 %v154
  %v194 = vunpack.c.l.b16 %v155
  %v195 = vunpack.c.l.b16 %v156
  %v196 = vunpack.c.l.b16 %v157
  %v197 = vunpack.c.l.b16 %v158
  %v198 = vunpack.c.l.b16 %v159
  %v199 = vunpack.c.l.b16 %v160
  %v200 = vunpack.c.l.b16 %v161
  %v201 = vunpack.c.l.b16 %v162
  %v202 = vpack.c.b16 %v187, %v186
  %v203 = vpack.c.b16 %v189, %v188
  %v204 = vpack.c.b16 %v191, %v190
  %v205 = vpack.c.b16 %v193, %v192
  %v206 = vpack.c.b16 %v195, %v194
  %v207 = vpack.c.b16 %v197, %v196
  %v208 = vpack.c.b16 %v199, %v198
  %v209 = vpack.c.b16 %v201, %v200
  %218 = vmatprep.subr.bf16.mxu0 0
  %219 = vmatpush1.bf16.msra.mxu0 %v202
  %220 = vmatprep.subr.bf16.mxu0 0
  %221 = vmatpush1.bf16.msra.mxu0 %v203
  %222 = vmatprep.subr.bf16.mxu0 0
  %223 = vmatpush1.bf16.msra.mxu0 %v204
  %224 = vmatprep.subr.bf16.mxu0 0
  %225 = vmatpush1.bf16.msra.mxu0 %v205
  %226 = vmatprep.subr.bf16.mxu0 0
  %227 = vmatpush1.bf16.msra.mxu0 %v206
  %228 = vmatprep.subr.bf16.mxu0 0
  %229 = vmatpush1.bf16.msra.mxu0 %v207
  %230 = vmatprep.subr.bf16.mxu0 0
  %231 = vmatpush1.bf16.msra.mxu0 %v208
  %232 = vmatprep.subr.bf16.mxu0 0
  %233 = vmatpush1.bf16.msra.mxu0 %v209
  %234 = vmatprep.subr.bf16.mxu0 0
  %235 = vmatpush1.bf16.msra.mxu0 0
  %236 = vmatprep.subr.bf16.mxu0 0
  %237 = vmatpush1.bf16.msra.mxu0 0
  %238 = vmatprep.subr.bf16.mxu0 0
  %239 = vmatpush1.bf16.msra.mxu0 0
  %240 = vmatprep.subr.bf16.mxu0 0
  %241 = vmatpush1.bf16.msra.mxu0 0
  %242 = vmatprep.subr.bf16.mxu0 0
  %243 = vmatpush1.bf16.msra.mxu0 0
  %244 = vmatprep.subr.bf16.mxu0 0
  %245 = vmatpush1.bf16.msra.mxu0 0
  %246 = vmatprep.subr.bf16.mxu0 0
  %247 = vmatpush1.bf16.msra.mxu0 0
  %248 = vmatprep.subr.bf16.mxu0 0
  %249 = vmatpush1.bf16.msra.mxu0 0
  %250 = vmatprep.mubr.bf16.mxu0 0
  %251 = vmatmul.mubr.bf16.gmra.mrb[0].mxu0 %v146
  %v252 = vpop.f32.mrb[0].mxu0
  %v253 = vadd.f32 %v168, %v252
  %v254 = vpop.f32.mrb[0].mxu0
  %v255 = vpop.f32.mrb[0].mxu0
  %v256 = vpop.f32.mrb[0].mxu0
  %257 = vdwg.mxu0
  %v258 = vmax.f32 %v253, 0.0
  %v259 = vpack.c.bf16 %v258, %v258
  %v260 = vld [vmem:[%s5] sm:$0xf]
  %v261 = vld [vmem:[%s5 + $0x4] sm:$0xf]
  %v262 = vld [vmem:[%s5 + $0x8] sm:$0xf]
  %v263 = vld [vmem:[%s5 + $0xc] sm:$0xf]
  %v264 = vld [vmem:[%s5 + $0x10] sm:$0xf]
  %v265 = vld [vmem:[%s5 + $0x14] sm:$0xf]
  %v266 = vld [vmem:[%s5 + $0x18] sm:$0xf]
  %v267 = vld [vmem:[%s5 + $0x1c] sm:$0xf]
  %v268 = vld [vmem:[%s5 + $0x20] sm:$0xf]
  %v269 = vld [vmem:[%s5 + $0x24] sm:$0xf]
  %v270 = vld [vmem:[%s5 + $0x28] sm:$0xf]
  %v271 = vld [vmem:[%s5 + $0x2c] sm:$0xf]
  %v272 = vld [vmem:[%s5 + $0x30] sm:$0xf]
  %v273 = vld [vmem:[%s5 + $0x34] sm:$0xf]
  %v274 = vld [vmem:[%s5 + $0x38] sm:$0xf]
  %v275 = vld [vmem:[%s5 + $0x3c] sm:$0xf]
  %v276 = vld [vmem:[%s6] sm:$0x1]
  %v278 = vlaneseq
  %v279 = vshrl.u32 %v278, 7
  %v280 = vsub.s32 0, %v279
  %v281 = vrot.slane %v276, %v280
  %v299 = vunpack.c.l.b16 %v260
  %v300 = vunpack.c.l.b16 %v261
  %v301 = vunpack.c.l.b16 %v262
  %v302 = vunpack.c.l.b16 %v263
  %v303 = vunpack.c.l.b16 %v264
  %v304 = vunpack.c.l.b16 %v265
  %v305 = vunpack.c.l.b16 %v266
  %v306 = vunpack.c.l.b16 %v267
  %v307 = vunpack.c.l.b16 %v268
  %v308 = vunpack.c.l.b16 %v269
  %v309 = vunpack.c.l.b16 %v270
  %v310 = vunpack.c.l.b16 %v271
  %v311 = vunpack.c.l.b16 %v272
  %v312 = vunpack.c.l.b16 %v273
  %v313 = vunpack.c.l.b16 %v274
  %v314 = vunpack.c.l.b16 %v275
  %v315 = vpack.c.b16 %v300, %v299
  %v316 = vpack.c.b16 %v302, %v301
  %v317 = vpack.c.b16 %v304, %v303
  %v318 = vpack.c.b16 %v306, %v305
  %v319 = vpack.c.b16 %v308, %v307
  %v320 = vpack.c.b16 %v310, %v309
  %v321 = vpack.c.b16 %v312, %v311
  %v322 = vpack.c.b16 %v314, %v313
  %331 = vmatprep.subr.bf16.mxu0 0
  %332 = vmatpush1.bf16.msra.mxu0 %v315
  %333 = vmatprep.subr.bf16.mxu0 0
  %334 = vmatpush1.bf16.msra.mxu0 %v316
  %335 = vmatprep.subr.bf16.mxu0 0
  %336 = vmatpush1.bf16.msra.mxu0 %v317
  %337 = vmatprep.subr.bf16.mxu0 0
  %338 = vmatpush1.bf16.msra.mxu0 %v318
  %339 = vmatprep.subr.bf16.mxu0 0
  %340 = vmatpush1.bf16.msra.mxu0 %v319
  %341 = vmatprep.subr.bf16.mxu0 0
  %342 = vmatpush1.bf16.msra.mxu0 %v320
  %343 = vmatprep.subr.bf16.mxu0 0
  %344 = vmatpush1.bf16.msra.mxu0 %v321
  %345 = vmatprep.subr.bf16.mxu0 0
  %346 = vmatpush1.bf16.msra.mxu0 %v322
  %347 = vmatprep.subr.bf16.mxu0 0
  %348 = vmatpush1.bf16.msra.mxu0 0
  %349 = vmatprep.subr.bf16.mxu0 0
  %350 = vmatpush1.bf16.msra.mxu0 0
  %351 = vmatprep.subr.bf16.mxu0 0
  %352 = vmatpush1.bf16.msra.mxu0 0
  %353 = vmatprep.subr.bf16.mxu0 0
  %354 = vmatpush1.bf16.msra.mxu0 0
  %355 = vmatprep.subr.bf16.mxu0 0
  %356 = vmatpush1.bf16.msra.mxu0 0
  %357 = vmatprep.subr.bf16.mxu0 0
  %358 = vmatpush1.bf16.msra.mxu0 0
  %359 = vmatprep.subr.bf16.mxu0 0
  %360 = vmatpush1.bf16.msra.mxu0 0
  %361 = vmatprep.subr.bf16.mxu0 0
  %362 = vmatpush1.bf16.msra.mxu0 0
  %363 = vmatprep.mubr.bf16.mxu0 0
  %364 = vmatmul.mubr.bf16.gmra.mrb[0].mxu0 %v259
  %v365 = vpop.f32.mrb[0].mxu0
  %v366 = vadd.f32 %v281, %v365
  %v367 = vpop.f32.mrb[0].mxu0
  %v368 = vpop.f32.mrb[0].mxu0
  %v369 = vpop.f32.mrb[0].mxu0
  %370 = vdwg.mxu0
  %v371 = vld [vmem:[%s7] sm:$0x1]
  %v372 = vtanh.pop %v366
  %v374 = vlaneseq
  %v375 = vshrl.u32 %v374, 7
  %v376 = vsub.s32 0, %v375
  %v377 = vrot.slane %v371, %v376
  %v379 = vmul.f32 %v377, %v372
  %v380 = vld [vmem:[%s8] sm:$0x1]
  %v382 = vlaneseq
  %v383 = vshrl.u32 %v382, 7
  %v384 = vsub.s32 0, %v383
  %v385 = vrot.slane %v380, %v384
  %v387 = vadd.f32 %v379, %v385
  %388 = vst [vmem:[%s9] sm:$0xff] %v387
  // Predicated region
  $region38: #{actor_forward.1} parent=0 // pred_check
    _
  $region39: #{actor_forward.1} parent=0 // pred_check_branch
    %390 = sbr.rel (0) target = $region41
  $region40: #{actor_forward.1} parent=0 // pred_region
    _
  $region41: #{actor_forward.1} parent=0 // pred_fallthru
    _
  // Predicated region
  $region42: #{actor_forward.1} parent=0 // pred_check
    _
  $region43: #{actor_forward.1} parent=0 // pred_check_branch
    %392 = sbr.rel (0) target = $region45
  $region44: #{actor_forward.1} parent=0 // pred_region
    _
  $region45: #{actor_forward.1} parent=0 // pred_fallthru
    _

</llo_original>
